<compile_context>
chip_gen: v7x
topology: tpu7x:2x2x1
jax: 0.10.0
libtpu: 0.0.40
codegen_flags: <defaults>
</compile_context>

<pallas_src>
import jax
import jax.numpy as jnp
from jax.experimental import pallas as pl
from jax.experimental.pallas import tpu as pltpu

BN_EPS = 1e-5


# --------------------------------------------------------------------------
# glue: sparsemax over a given axis (parameter preprocessing only)
# --------------------------------------------------------------------------
def sparsemax(z, axis):
    n = z.shape[axis]
    z_sorted = -jnp.sort(-z, axis=axis)                       # descending
    z_cumsum = jnp.cumsum(z_sorted, axis=axis)
    shape = [1] * z.ndim
    shape[axis] = n
    k = jnp.arange(1, n + 1, dtype=z.dtype).reshape(shape)
    support = (1.0 + k * z_sorted) > z_cumsum
    k_support = jnp.sum(support.astype(jnp.int32), axis=axis, keepdims=True)
    tau_sum = jnp.take_along_axis(z_cumsum, k_support - 1, axis=axis)
    tau = (tau_sum - 1.0) / k_support.astype(z.dtype)
    return jnp.maximum(z - tau, 0.0)


# --------------------------------------------------------------------------
# parameter packing (pure JAX, runs once outside the kernel)
# --------------------------------------------------------------------------
def _block_diag(w):
    """(T, K, K) -> (T*K, T*K) block-diagonal matrix."""
    T, K, _ = w.shape
    eye = jnp.eye(T, dtype=w.dtype)
    return jnp.einsum("ts,tij->tisj", eye, w).reshape(T * K, T * K)


def _pack_cart(params, projection):
    """Lane-pack the T trees of one CART layer, fold tree_weight & 1/T in."""
    T, _, K = params["cut"].shape
    O = params["b2"].shape[2]
    if projection:
        proj = sparsemax(params["fsm"], axis=1)                   # (T, F, K)
        proj_packed = jnp.transpose(proj, (1, 0, 2)).reshape(-1, T * K)
    else:
        # No feature selection (K == n_features): an identity-tiled projection
        # keeps the kernel uniform — every layer is one (B,F)@(F,T*K) matmul,
        # which is <= 1/T of the cost of the block-diagonal w1 matmul.
        proj_packed = jnp.tile(jnp.eye(K, dtype=jnp.float32), (1, T))
    scale = params["tw"] / jnp.float32(T)                         # fold tw, 1/T
    return {
        "proj": proj_packed,                                      # (F, T*K)
        "cb1": jnp.stack([params["cut"].reshape(T * K),
                          params["b1"].reshape(T * K)], axis=0),  # (2, T*K)
        "w1": _block_diag(params["w1"]),                          # (T*K, T*K)
        "w2": (params["w2"] * scale).reshape(T * K, O),           # (T*K, O)
        "b2": jnp.sum(params["b2"] * scale, axis=0),              # (1, O)
    }


def pack_ncart_params(layer_params, n_features, n_trees):
    n_layers = len(layer_params)
    last_p, last_projection = layer_params[-1]
    mids = layer_params[:-1]
    for p, proj in mids:
        assert not proj and p["cut"].shape[2] == n_features

    TF = n_trees * n_features
    mid_list = [_pack_cart(p, False) for p, _ in mids]
    # One zero pad slot: fetched (but never used) at the final grid step; also
    # keeps the n_layers == 1 corner case well-formed.
    mid_list.append({
        "proj": jnp.zeros((n_features, TF), jnp.float32),
        "cb1": jnp.zeros((2, TF), jnp.float32),
        "w1": jnp.zeros((TF, TF), jnp.float32),
        "w2": jnp.zeros((TF, n_features), jnp.float32),
        "b2": jnp.zeros((1, n_features), jnp.float32),
    })
    mid = {k: jnp.stack([m[k] for m in mid_list], axis=0)
           for k in ("proj", "cb1", "w1", "w2", "b2")}
    return {"mid": mid, "last": _pack_cart(last_p, last_projection)}


# --------------------------------------------------------------------------
# fused NCART kernel: one grid step == one CART layer
# --------------------------------------------------------------------------
def _batchnorm(xv):
    # BatchNorm1d in training mode: biased batch stats, gamma=1, beta=0.
    mean = jnp.mean(xv, axis=0, keepdims=True)
    var = jnp.mean((xv - mean) ** 2, axis=0, keepdims=True)
    return (xv - mean) * jax.lax.rsqrt(var + BN_EPS)


def _forest(xp, cut, b1, w1_bd, w2_stk, b2):
    """Lane-packed forest: xp (B, T*K) -> (B, O)."""
    score = jax.nn.sigmoid(xp - cut)
    o1 = jnp.maximum(
        jnp.dot(score, w1_bd, preferred_element_type=jnp.float32) + b1, 0.0)
    return jnp.dot(o1, w2_stk, preferred_element_type=jnp.float32) + b2


def _ncart_kernel(x_hbm,
                  mproj_ref, mcb1_ref, mw1_ref, mw2_ref, mb2_ref,
                  lproj_ref, lcb1_ref, lw1_ref, lw2_ref, lb2_ref,
                  o_ref, x_scr, x_sem):
    layer = pl.program_id(0)
    last = pl.num_programs(0) - 1

    @pl.when(layer == 0)
    def _():
        # Pull x straight from HBM into the persistent activation scratch —
        # no second (B, F) input block stays resident in VMEM.
        cp = pltpu.make_async_copy(x_hbm, x_scr, x_sem)
        cp.start()
        cp.wait()

    xv = x_scr[...]
    xbn = _batchnorm(xv)

    @pl.when(layer < last)
    def _():
        # intermediate CART layer + residual ReLU of NCART.forward
        xp = jnp.dot(xbn, mproj_ref[0], preferred_element_type=jnp.float32)
        cb1 = mcb1_ref[0]                                       # (2, T*F)
        out = _forest(xp, cb1[0:1, :], cb1[1:2, :],
                      mw1_ref[0], mw2_ref[0], mb2_ref[0])       # (B, F)
        x_scr[...] = jnp.maximum(out + xv, 0.0)

    @pl.when(layer == last)
    def _():
        # last CART layer (sparsemax feature-selection folded into lproj)
        xp = jnp.dot(xbn, lproj_ref[...], preferred_element_type=jnp.float32)
        cb1 = lcb1_ref[...]                                     # (2, T*K)
        o_ref[...] = _forest(xp, cb1[0:1, :], cb1[1:2, :],
                             lw1_ref[...], lw2_ref[...], lb2_ref[...])


def ncart_forward(x, packed):
    B, F = x.shape
    mid, last = packed["mid"], packed["last"]
    L = mid["w1"].shape[0]            # n_layers  (L-1 real mid layers + 1 pad)
    TF = mid["w1"].shape[1]           # n_trees * n_features
    TK = last["w1"].shape[0]          # n_trees * K of the last layer
    O = last["w2"].shape[1]           # n_out

    mid_map = lambda l: (l, 0, 0)
    const_map = lambda l: (0, 0)

    in_specs = [
        pl.BlockSpec(memory_space=pl.ANY),          # x stays in HBM
        pl.BlockSpec((1, F, TF), mid_map),          # mid projection
        pl.BlockSpec((1, 2, TF), mid_map),          # mid cut & bias1 (packed)
        pl.BlockSpec((1, TF, TF), mid_map),         # mid w1 (block diagonal)
        pl.BlockSpec((1, TF, F), mid_map),          # mid w2 (tw/T folded in)
        pl.BlockSpec((1, 1, F), mid_map),           # mid b2 (tw/T folded in)
        pl.BlockSpec((F, TK), const_map),           # last projection
        pl.BlockSpec((2, TK), const_map),           # last cut & bias1
        pl.BlockSpec((TK, TK), const_map),          # last w1
        pl.BlockSpec((TK, O), const_map),           # last w2
        pl.BlockSpec((1, O), const_map),            # last b2
    ]
    args = (x,
            mid["proj"], mid["cb1"], mid["w1"], mid["w2"], mid["b2"],
            last["proj"], last["cb1"], last["w1"], last["w2"], last["b2"])

    return pl.pallas_call(
        _ncart_kernel,
        out_shape=jax.ShapeDtypeStruct((B, O), jnp.float32),
        grid_spec=pltpu.PrefetchScalarGridSpec(
            num_scalar_prefetch=0,
            grid=(L,),
            in_specs=in_specs,
            out_specs=pl.BlockSpec((B, O), lambda l: (0, 0)),
            scratch_shapes=[
                pltpu.VMEM((B, F), jnp.float32),    # persistent activation
                pltpu.SemaphoreType.DMA(()),        # one-shot x DMA
            ],
        ),
        compiler_params=pltpu.CompilerParams(
            dimension_semantics=("arbitrary",)),    # layers are sequential
    )(*args)


# --------------------------------------------------------------------------
# parameter init (mirrors torch.randn init in CART.__init__)
# --------------------------------------------------------------------------
def init_cart_params(key, n_features, n_selected, n_out, n_trees):
    projection = (n_features > n_selected) and (n_features > n_out)
    K = n_selected if projection else n_features
    keys = jax.random.split(key, 7)
    p = {}
    if projection:
        p["fsm"] = jax.random.normal(keys[0], (n_trees, n_features, n_selected),
                                     jnp.float32)
    p["cut"] = jax.random.normal(keys[1], (n_trees, 1, K), jnp.float32)
    p["w1"] = jax.random.normal(keys[2], (n_trees, K, K), jnp.float32)
    p["b1"] = jax.random.normal(keys[3], (n_trees, 1, K), jnp.float32)
    p["w2"] = jax.random.normal(keys[4], (n_trees, K, n_out), jnp.float32)
    p["b2"] = jax.random.normal(keys[5], (n_trees, 1, n_out), jnp.float32)
    p["tw"] = jax.random.normal(keys[6], (n_trees, 1, n_out), jnp.float32)
    return p, projection


def init_ncart_params(key, n_features, n_selected, n_out, n_trees, n_layers):
    keys = jax.random.split(key, n_layers)
    layers = []
    for i in range(n_layers - 1):
        # intermediate CART layers have n_out == n_features -> no projection
        layers.append(init_cart_params(keys[i], n_features, n_selected,
                                       n_features, n_trees))
    layers.append(init_cart_params(keys[-1], n_features, n_selected,
                                   n_out, n_trees))
    return layers


# --------------------------------------------------------------------------
# pure-JAX reference of the PyTorch forward (for a sanity check only)
# --------------------------------------------------------------------------
def _cart_reference(x, p, projection):
    mean = jnp.mean(x, axis=0, keepdims=True)
    var = jnp.mean((x - mean) ** 2, axis=0, keepdims=True)
    xbn = (x - mean) * jax.lax.rsqrt(var + BN_EPS)
    hi = jax.lax.Precision.HIGHEST
    if projection:
        proj = sparsemax(p["fsm"], axis=1)                          # (T, F, K)
        xp = jnp.einsum("bf,tfk->tbk", xbn, proj, precision=hi)
    else:
        xp = xbn
    score = jax.nn.sigmoid(xp - p["cut"])                           # (T, B, K)
    o1 = jax.nn.relu(
        jnp.einsum("tbk,tko->tbo", score, p["w1"], precision=hi) + p["b1"])
    o2 = jnp.einsum("tbk,tko->tbo", o1, p["w2"], precision=hi) + p["b2"]
    return jnp.mean(o2 * p["tw"], axis=0)


def ncart_reference(x, layer_params):
    for p, proj in layer_params[:-1]:
        x = jax.nn.relu(_cart_reference(x, p, proj) + x)
    p, proj = layer_params[-1]
    return _cart_reference(x, p, proj)


# --------------------------------------------------------------------------
if __name__ == "__main__":
    n_features, n_selected, n_out = 16, 8, 4
    n_trees, n_layers = 4, 2
    batch = 8
    # mask_type == 'sparsemax' (entmax15 not implemented)

    key = jax.random.PRNGKey(0)
    key_x, key_p = jax.random.split(key)
    x = jax.random.normal(key_x, (batch, n_features), jnp.float32)

    layer_params = init_ncart_params(key_p, n_features, n_selected, n_out,
                                     n_trees, n_layers)
    packed = pack_ncart_params(layer_params, n_features, n_trees)

    out = jax.block_until_ready(jax.jit(ncart_forward)(x, packed))
    assert out.shape == (batch, n_out), out.shape

    # sanity check against a pure-JAX reference of the PyTorch forward
    ref = ncart_reference(x, layer_params)
    err = float(jnp.max(jnp.abs(out - ref)))
    scale = float(jnp.max(jnp.abs(ref)))
    assert err <= 0.1 * max(scale, 1.0), (err, scale)

    print("KERNEL_OK")
</pallas_src>

<mosaic_0001>
module attributes {stable_mosaic.version = 11 : i64} {
  func.func @_ncart_kernel(%arg0: i32, %arg1: memref<8x16xf32, #tpu.memory_space<any>>, %arg2: memref<1x16x64xf32, #tpu.memory_space<vmem>>, %arg3: memref<1x2x64xf32, #tpu.memory_space<vmem>>, %arg4: memref<1x64x64xf32, #tpu.memory_space<vmem>>, %arg5: memref<1x64x16xf32, #tpu.memory_space<vmem>>, %arg6: memref<1x1x16xf32, #tpu.memory_space<vmem>>, %arg7: memref<16x32xf32, #tpu.memory_space<vmem>>, %arg8: memref<2x32xf32, #tpu.memory_space<vmem>>, %arg9: memref<32x32xf32, #tpu.memory_space<vmem>>, %arg10: memref<32x4xf32, #tpu.memory_space<vmem>>, %arg11: memref<1x4xf32, #tpu.memory_space<vmem>>, %arg12: memref<8x4xf32, #tpu.memory_space<vmem>>, %arg13: memref<8x16xf32, #tpu.memory_space<vmem>>, %arg14: memref<!tpu.dma_semaphore, #tpu.memory_space<semaphore_mem>>) attributes {dimension_semantics = [#tpu.dimension_semantics<arbitrary>], iteration_bounds = array<i64: 2>, scalar_prefetch = 0 : i64, scratch_operands = 2 : i64, tpu.core_type = #tpu.core_type<tc>, window_params = [{}, {transform_indices = @transform_1, window_bounds = array<i64: 1, 16, 64>}, {transform_indices = @transform_2, window_bounds = array<i64: 1, 2, 64>}, {transform_indices = @transform_3, window_bounds = array<i64: 1, 64, 64>}, {transform_indices = @transform_4, window_bounds = array<i64: 1, 64, 16>}, {transform_indices = @transform_5, window_bounds = array<i64: 1, 1, 16>}, {pipeline_mode = #tpu.pipeline_mode<synchronous>, transform_indices = @transform_6, window_bounds = array<i64: 16, 32>}, {pipeline_mode = #tpu.pipeline_mode<synchronous>, transform_indices = @transform_7, window_bounds = array<i64: 2, 32>}, {pipeline_mode = #tpu.pipeline_mode<synchronous>, transform_indices = @transform_8, window_bounds = array<i64: 32, 32>}, {pipeline_mode = #tpu.pipeline_mode<synchronous>, transform_indices = @transform_9, window_bounds = array<i64: 32, 4>}, {pipeline_mode = #tpu.pipeline_mode<synchronous>, transform_indices = @transform_10, window_bounds = array<i64: 1, 4>}, {pipeline_mode = #tpu.pipeline_mode<synchronous>, transform_indices = @transform_11, window_bounds = array<i64: 8, 4>}]} {
    %c0_i32 = arith.constant 0 : i32
    %0 = arith.cmpi eq, %arg0, %c0_i32 : i32
    %1 = arith.extui %0 : i1 to i32
    %c0_i32_0 = arith.constant 0 : i32
    %2 = arith.cmpi ne, %1, %c0_i32_0 : i32
    scf.if %2 {
      tpu.enqueue_dma source(%arg1 : memref<8x16xf32, #tpu.memory_space<any>>) target(%arg13 : memref<8x16xf32, #tpu.memory_space<vmem>>) target_semaphore(%arg14 : memref<!tpu.dma_semaphore, #tpu.memory_space<semaphore_mem>>)
      tpu.wait_dma2 semaphore(%arg14 : memref<!tpu.dma_semaphore, #tpu.memory_space<semaphore_mem>>) src(%arg1 : memref<8x16xf32, #tpu.memory_space<any>>) dst(%arg13 : memref<8x16xf32, #tpu.memory_space<vmem>>)
    } else {
    }
    %c0 = arith.constant 0 : index
    %c0_1 = arith.constant 0 : index
    %3 = vector.load %arg13[%c0, %c0_1] : memref<8x16xf32, #tpu.memory_space<vmem>>, vector<8x16xf32>
    %cst = arith.constant dense<0.000000e+00> : vector<16xf32>
    %4 = vector.multi_reduction <add>, %3, %cst [0] : vector<8x16xf32> to vector<16xf32>
    %5 = vector.shape_cast %4 : vector<16xf32> to vector<1x16xf32>
    %cst_2 = arith.constant 8.000000e+00 : f32
    %6 = vector.broadcast %cst_2 : f32 to vector<1x16xf32>
    %7 = arith.divf %5, %6 : vector<1x16xf32>
    %8 = vector.broadcast %7 : vector<1x16xf32> to vector<8x16xf32>
    %9 = arith.subf %3, %8 : vector<8x16xf32>
    %10 = arith.mulf %9, %9 : vector<8x16xf32>
    %cst_3 = arith.constant dense<0.000000e+00> : vector<16xf32>
    %11 = vector.multi_reduction <add>, %10, %cst_3 [0] : vector<8x16xf32> to vector<16xf32>
    %12 = vector.shape_cast %11 : vector<16xf32> to vector<1x16xf32>
    %cst_4 = arith.constant 8.000000e+00 : f32
    %13 = vector.broadcast %cst_4 : f32 to vector<1x16xf32>
    %14 = arith.divf %12, %13 : vector<1x16xf32>
    %15 = vector.broadcast %7 : vector<1x16xf32> to vector<8x16xf32>
    %16 = arith.subf %3, %15 : vector<8x16xf32>
    %cst_5 = arith.constant 9.99999974E-6 : f32
    %17 = vector.broadcast %cst_5 : f32 to vector<1x16xf32>
    %18 = arith.addf %14, %17 : vector<1x16xf32>
    %19 = math.rsqrt %18 : vector<1x16xf32>
    %20 = vector.broadcast %19 : vector<1x16xf32> to vector<8x16xf32>
    %21 = arith.mulf %16, %20 : vector<8x16xf32>
    %c1_i32 = arith.constant 1 : i32
    %22 = arith.cmpi slt, %arg0, %c1_i32 : i32
    %23 = arith.extui %22 : i1 to i32
    %c0_i32_6 = arith.constant 0 : i32
    %24 = arith.cmpi ne, %23, %c0_i32_6 : i32
    scf.if %24 {
      %c0_9 = arith.constant 0 : index
      %c0_10 = arith.constant 0 : index
      %c0_11 = arith.constant 0 : index
      %28 = vector.load %arg2[%c0_9, %c0_10, %c0_11] : memref<1x16x64xf32, #tpu.memory_space<vmem>>, vector<1x16x64xf32>
      %29 = vector.shape_cast %28 : vector<1x16x64xf32> to vector<16x64xf32>
      %cst_12 = arith.constant dense<0.000000e+00> : vector<8x64xf32>
      %30 = tpu.matmul %21, %29, %cst_12 {dimension_numbers = #tpu.dot_dimension_numbers<[1], [0], [0], [1], [0, 0, 1, 1], [], []>} : vector<8x16xf32>, vector<16x64xf32>, vector<8x64xf32> -> vector<8x64xf32>
      %c0_13 = arith.constant 0 : index
      %c0_14 = arith.constant 0 : index
      %c0_15 = arith.constant 0 : index
      %31 = vector.load %arg3[%c0_13, %c0_14, %c0_15] : memref<1x2x64xf32, #tpu.memory_space<vmem>>, vector<1x2x64xf32>
      %32 = vector.shape_cast %31 : vector<1x2x64xf32> to vector<2x64xf32>
      %33 = vector.extract_strided_slice %32 {offsets = [0, 0], sizes = [1, 64], strides = [1, 1]} : vector<2x64xf32> to vector<1x64xf32>
      %34 = vector.extract_strided_slice %32 {offsets = [1, 0], sizes = [1, 64], strides = [1, 1]} : vector<2x64xf32> to vector<1x64xf32>
      %c0_16 = arith.constant 0 : index
      %c0_17 = arith.constant 0 : index
      %c0_18 = arith.constant 0 : index
      %35 = vector.load %arg4[%c0_16, %c0_17, %c0_18] : memref<1x64x64xf32, #tpu.memory_space<vmem>>, vector<1x64x64xf32>
      %36 = vector.shape_cast %35 : vector<1x64x64xf32> to vector<64x64xf32>
      %c0_19 = arith.constant 0 : index
      %c0_20 = arith.constant 0 : index
      %c0_21 = arith.constant 0 : index
      %37 = vector.load %arg5[%c0_19, %c0_20, %c0_21] : memref<1x64x16xf32, #tpu.memory_space<vmem>>, vector<1x64x16xf32>
      %38 = vector.shape_cast %37 : vector<1x64x16xf32> to vector<64x16xf32>
      %c0_22 = arith.constant 0 : index
      %c0_23 = arith.constant 0 : index
      %c0_24 = arith.constant 0 : index
      %39 = vector.load %arg6[%c0_22, %c0_23, %c0_24] : memref<1x1x16xf32, #tpu.memory_space<vmem>>, vector<1x1x16xf32>
      %40 = vector.shape_cast %39 : vector<1x1x16xf32> to vector<1x16xf32>
      %41 = vector.broadcast %33 : vector<1x64xf32> to vector<8x64xf32>
      %42 = arith.subf %30, %41 : vector<8x64xf32>
      %43 = arith.negf %42 : vector<8x64xf32>
      %44 = math.exp %43 : vector<8x64xf32>
      %cst_25 = arith.constant 1.000000e+00 : f32
      %45 = vector.broadcast %cst_25 : f32 to vector<8x64xf32>
      %46 = arith.addf %45, %44 : vector<8x64xf32>
      %47 = arith.divf %45, %46 : vector<8x64xf32>
      %cst_26 = arith.constant dense<0.000000e+00> : vector<8x64xf32>
      %48 = tpu.matmul %47, %36, %cst_26 {dimension_numbers = #tpu.dot_dimension_numbers<[1], [0], [0], [1], [0, 0, 1, 1], [], []>} : vector<8x64xf32>, vector<64x64xf32>, vector<8x64xf32> -> vector<8x64xf32>
      %49 = vector.broadcast %34 : vector<1x64xf32> to vector<8x64xf32>
      %50 = arith.addf %48, %49 : vector<8x64xf32>
      %cst_27 = arith.constant 0.000000e+00 : f32
      %51 = vector.broadcast %cst_27 : f32 to vector<8x64xf32>
      %52 = arith.maximumf %50, %51 : vector<8x64xf32>
      %cst_28 = arith.constant dense<0.000000e+00> : vector<8x16xf32>
      %53 = tpu.matmul %52, %38, %cst_28 {dimension_numbers = #tpu.dot_dimension_numbers<[1], [0], [0], [1], [0, 0, 1, 1], [], []>} : vector<8x64xf32>, vector<64x16xf32>, vector<8x16xf32> -> vector<8x16xf32>
      %54 = vector.broadcast %40 : vector<1x16xf32> to vector<8x16xf32>
      %55 = arith.addf %53, %54 : vector<8x16xf32>
      %56 = arith.addf %55, %3 : vector<8x16xf32>
      %cst_29 = arith.constant 0.000000e+00 : f32
      %57 = vector.broadcast %cst_29 : f32 to vector<8x16xf32>
      %58 = arith.maximumf %56, %57 : vector<8x16xf32>
      %c0_30 = arith.constant 0 : index
      %c0_31 = arith.constant 0 : index
      %59 = vector.load %arg13[%c0_30, %c0_31] : memref<8x16xf32, #tpu.memory_space<vmem>>, vector<8x16xf32>
      tpu.vector_store %arg13[%c0_30, %c0_31], %58 {strides = array<i32>} : memref<8x16xf32, #tpu.memory_space<vmem>>, vector<8x16xf32>,
    } else {
    }
    %c1_i32_7 = arith.constant 1 : i32
    %25 = arith.cmpi eq, %arg0, %c1_i32_7 : i32
    %26 = arith.extui %25 : i1 to i32
    %c0_i32_8 = arith.constant 0 : i32
    %27 = arith.cmpi ne, %26, %c0_i32_8 : i32
    scf.if %27 {
      %c0_9 = arith.constant 0 : index
      %c0_10 = arith.constant 0 : index
      %28 = vector.load %arg7[%c0_9, %c0_10] : memref<16x32xf32, #tpu.memory_space<vmem>>, vector<16x32xf32>
      %cst_11 = arith.constant dense<0.000000e+00> : vector<8x32xf32>
      %29 = tpu.matmul %21, %28, %cst_11 {dimension_numbers = #tpu.dot_dimension_numbers<[1], [0], [0], [1], [0, 0, 1, 1], [], []>} : vector<8x16xf32>, vector<16x32xf32>, vector<8x32xf32> -> vector<8x32xf32>
      %c0_12 = arith.constant 0 : index
      %c0_13 = arith.constant 0 : index
      %30 = vector.load %arg8[%c0_12, %c0_13] : memref<2x32xf32, #tpu.memory_space<vmem>>, vector<2x32xf32>
      %31 = vector.extract_strided_slice %30 {offsets = [0, 0], sizes = [1, 32], strides = [1, 1]} : vector<2x32xf32> to vector<1x32xf32>
      %32 = vector.extract_strided_slice %30 {offsets = [1, 0], sizes = [1, 32], strides = [1, 1]} : vector<2x32xf32> to vector<1x32xf32>
      %c0_14 = arith.constant 0 : index
      %c0_15 = arith.constant 0 : index
      %33 = vector.load %arg9[%c0_14, %c0_15] : memref<32x32xf32, #tpu.memory_space<vmem>>, vector<32x32xf32>
      %c0_16 = arith.constant 0 : index
      %c0_17 = arith.constant 0 : index
      %34 = vector.load %arg10[%c0_16, %c0_17] : memref<32x4xf32, #tpu.memory_space<vmem>>, vector<32x4xf32>
      %c0_18 = arith.constant 0 : index
      %c0_19 = arith.constant 0 : index
      %35 = vector.load %arg11[%c0_18, %c0_19] : memref<1x4xf32, #tpu.memory_space<vmem>>, vector<1x4xf32>
      %36 = vector.broadcast %31 : vector<1x32xf32> to vector<8x32xf32>
      %37 = arith.subf %29, %36 : vector<8x32xf32>
      %38 = arith.negf %37 : vector<8x32xf32>
      %39 = math.exp %38 : vector<8x32xf32>
      %cst_20 = arith.constant 1.000000e+00 : f32
      %40 = vector.broadcast %cst_20 : f32 to vector<8x32xf32>
      %41 = arith.addf %40, %39 : vector<8x32xf32>
      %42 = arith.divf %40, %41 : vector<8x32xf32>
      %cst_21 = arith.constant dense<0.000000e+00> : vector<8x32xf32>
      %43 = tpu.matmul %42, %33, %cst_21 {dimension_numbers = #tpu.dot_dimension_numbers<[1], [0], [0], [1], [0, 0, 1, 1], [], []>} : vector<8x32xf32>, vector<32x32xf32>, vector<8x32xf32> -> vector<8x32xf32>
      %44 = vector.broadcast %32 : vector<1x32xf32> to vector<8x32xf32>
      %45 = arith.addf %43, %44 : vector<8x32xf32>
      %cst_22 = arith.constant 0.000000e+00 : f32
      %46 = vector.broadcast %cst_22 : f32 to vector<8x32xf32>
      %47 = arith.maximumf %45, %46 : vector<8x32xf32>
      %cst_23 = arith.constant dense<0.000000e+00> : vector<8x4xf32>
      %48 = tpu.matmul %47, %34, %cst_23 {dimension_numbers = #tpu.dot_dimension_numbers<[1], [0], [0], [1], [0, 0, 1, 1], [], []>} : vector<8x32xf32>, vector<32x4xf32>, vector<8x4xf32> -> vector<8x4xf32>
      %49 = vector.broadcast %35 : vector<1x4xf32> to vector<8x4xf32>
      %50 = arith.addf %48, %49 : vector<8x4xf32>
      %c0_24 = arith.constant 0 : index
      %c0_25 = arith.constant 0 : index
      %51 = vector.load %arg12[%c0_24, %c0_25] : memref<8x4xf32, #tpu.memory_space<vmem>>, vector<8x4xf32>
      tpu.vector_store %arg12[%c0_24, %c0_25], %50 {strides = array<i32>} : memref<8x4xf32, #tpu.memory_space<vmem>>, vector<8x4xf32>,
    } else {
    }
    return
  }
  func.func @transform_1(%arg0: i32) -> (i32, i32, i32) {
    %c0_i32 = arith.constant 0 : i32
    %c0_i32_0 = arith.constant 0 : i32
    %c0_i32_1 = arith.constant 0 : i32
    return %arg0, %c0_i32, %c0_i32_0 : i32, i32, i32
  }
  func.func @transform_2(%arg0: i32) -> (i32, i32, i32) {
    %c0_i32 = arith.constant 0 : i32
    %c0_i32_0 = arith.constant 0 : i32
    %c0_i32_1 = arith.constant 0 : i32
    return %arg0, %c0_i32, %c0_i32_0 : i32, i32, i32
  }
  func.func @transform_3(%arg0: i32) -> (i32, i32, i32) {
    %c0_i32 = arith.constant 0 : i32
    %c0_i32_0 = arith.constant 0 : i32
    %c0_i32_1 = arith.constant 0 : i32
    return %arg0, %c0_i32, %c0_i32_0 : i32, i32, i32
  }
  func.func @transform_4(%arg0: i32) -> (i32, i32, i32) {
    %c0_i32 = arith.constant 0 : i32
    %c0_i32_0 = arith.constant 0 : i32
    %c0_i32_1 = arith.constant 0 : i32
    return %arg0, %c0_i32, %c0_i32_0 : i32, i32, i32
  }
  func.func @transform_5(%arg0: i32) -> (i32, i32, i32) {
    %c0_i32 = arith.constant 0 : i32
    %c0_i32_0 = arith.constant 0 : i32
    %c0_i32_1 = arith.constant 0 : i32
    return %arg0, %c0_i32, %c0_i32_0 : i32, i32, i32
  }
  func.func @transform_6(%arg0: i32) -> (i32, i32) {
    %c0_i32 = arith.constant 0 : i32
    %c0_i32_0 = arith.constant 0 : i32
    %c0_i32_1 = arith.constant 0 : i32
    return %c0_i32, %c0_i32_0 : i32, i32
  }
  func.func @transform_7(%arg0: i32) -> (i32, i32) {
    %c0_i32 = arith.constant 0 : i32
    %c0_i32_0 = arith.constant 0 : i32
    %c0_i32_1 = arith.constant 0 : i32
    return %c0_i32, %c0_i32_0 : i32, i32
  }
  func.func @transform_8(%arg0: i32) -> (i32, i32) {
    %c0_i32 = arith.constant 0 : i32
    %c0_i32_0 = arith.constant 0 : i32
    %c0_i32_1 = arith.constant 0 : i32
    return %c0_i32, %c0_i32_0 : i32, i32
  }
  func.func @transform_9(%arg0: i32) -> (i32, i32) {
    %c0_i32 = arith.constant 0 : i32
    %c0_i32_0 = arith.constant 0 : i32
    %c0_i32_1 = arith.constant 0 : i32
    return %c0_i32, %c0_i32_0 : i32, i32
  }
  func.func @transform_10(%arg0: i32) -> (i32, i32) {
    %c0_i32 = arith.constant 0 : i32
    %c0_i32_0 = arith.constant 0 : i32
    %c0_i32_1 = arith.constant 0 : i32
    return %c0_i32, %c0_i32_0 : i32, i32
  }
  func.func @transform_11(%arg0: i32) -> (i32, i32) {
    %c0_i32 = arith.constant 0 : i32
    %c0_i32_0 = arith.constant 0 : i32
    %c0_i32_1 = arith.constant 0 : i32
    return %c0_i32, %c0_i32_0 : i32, i32
  }
}

</mosaic_0001>

<llo_original>
// kernel: ncart_forward.1
$region0: #{ncart_forward.1}
  #allocation0 [shape = 'u32[]', space=smem, size = 0x4, offset = 0x4, fixed_abs, tag = 'smem constant byte address 0x4 - core index']
  #allocation1 [shape = 'u32[144,128]{1,0:T(1,128)}', space=vmem, size = 0x12000, scoped, tag = 'internal scratch']
  #allocation2 [shape = 'f32[8,16]{1,0:T(8,128)}', space=vmem, size = 0x1000, scoped, tag = 'scratch operand']
  #allocation3 [shape = 's32[1]{0}', space=sflag, size = 0x4, scoped, tag = 'scratch operand']
  #allocation11 [shape = 's32[]', space=sflag, size = 0x4, offset = 0, fixed_abs, tag = 'sflag constant byte address 0x0 - dummy sync flag']
  %s0 = inlined_call_operand.vmem [shape: f32[8,16], index: 0, kind: input, shape index: {}]
  %s1 = inlined_call_operand.vmem [shape: f32[2,16,64], index: 1, kind: input, shape index: {}]
  %s2 = inlined_call_operand.hbm [shape: f32[2,2,64], index: 2, kind: input, shape index: {}]
  %s3 = inlined_call_operand.vmem [shape: f32[2,64,64], index: 3, kind: input, shape index: {}]
  %s4 = inlined_call_operand.vmem [shape: f32[2,64,16], index: 4, kind: input, shape index: {}]
  %s5 = inlined_call_operand.hbm [shape: f32[2,1,16], index: 5, kind: input, shape index: {}]
  %s6 = inlined_call_operand.hbm [shape: f32[16,32], index: 6, kind: input, shape index: {}]
  %s7 = inlined_call_operand.hbm [shape: f32[2,32], index: 7, kind: input, shape index: {}]
  %s8 = inlined_call_operand.vmem [shape: f32[32,32], index: 8, kind: input, shape index: {}]
  %s9 = inlined_call_operand.vmem [shape: f32[32,4], index: 9, kind: input, shape index: {}]
  %s10 = inlined_call_operand.vmem [shape: f32[1,4], index: 10, kind: input, shape index: {}]
  %s11 = inlined_call_operand.vmem [shape: f32[8,4], index: 11, kind: output, shape index: {}]
  %s12 = sld [smem:[#allocation0]]
  $region135: #{ncart_forward.1} parent=0
    _
  %s14 = ssub.s32 1, %s12
  %s15 = scalar_select 0, %s14, %s12
  $region1: #{ncart_forward.1} parent=0
    #allocation4 [shape = 'u8[2048]{0}', space=vmem, size = 0x800, scoped, tag = 'input window, operand 2']
    #allocation5 [shape = 's32[2]{0}', space=sflag, size = 0x8, scoped, tag = 'scoped memory for ncart_forward.1']
    #allocation6 [shape = 'u8[1024]{0}', space=vmem, size = 0x400, scoped, tag = 'input window, operand 5']
    #allocation7 [shape = 's32[2]{0}', space=sflag, size = 0x8, scoped, tag = 'scoped memory for ncart_forward.1']
    #allocation8 [shape = 'u8[8192]{0}', space=vmem, size = 0x2000, scoped, tag = 'input window, operand 6, single buffered']
    #allocation9 [shape = 'u8[1024]{0}', space=vmem, size = 0x400, scoped, tag = 'input window, operand 7, single buffered']
    #allocation10 [shape = 's32[1]{0}', space=sflag, size = 0x4, scoped, tag = 'scoped memory for ncart_forward.1']
    %16 = vsyncpa [#allocation5], 0
    %s17 = scalar_lea.sflag [#allocation5], 1
    %18 = vsyncpa %s17, 0
    %19 = vsyncpa [#allocation7], 0
    %s20 = scalar_lea.sflag [#allocation7], 1
    %21 = vsyncpa %s20, 0
    %22 = vsyncpa [#allocation10], 0
    loop: start=0, step=1, limit=4
    $region2: #{ncart_forward.1} parent=1 // loop_pre_header
      _
    $region3: #{ncart_forward.1} parent=1 // loop_header
      %s24 = sphi 0, %s28
      %p25 = scmp.ge.s32.totalorder %s24, 4
      %s34 = sphi 0, %s36
      %s37 = sphi 0, %s34
      %s38 = sphi 0, %s37
      %s54 = sphi 0, %s38
      %s60 = sphi 0, %s62
      %s63 = sphi 0, %s60
      %s64 = sphi 0, %s63
      %s80 = sphi 0, %s64
      %s86 = sphi 0, %s88
      %s89 = sphi 0, %s86
      %s90 = sphi 0, %s89
      %s106 = sphi 0, %s90
      %s112 = sphi 0, %s114
      %s115 = sphi 0, %s112
      %s116 = sphi 0, %s115
      %s132 = sphi 0, %s116
      %s138 = sphi 0, %s140
      %s141 = sphi 0, %s138
      %s142 = sphi 0, %s141
      %s158 = sphi 0, %s142
      %s162 = sphi 0, %s162
      %s164 = sphi 0, %s162
      %s165 = sphi 0, %s164
      %s179 = sphi 0, %s165
      %s183 = sphi 0, %s183
      %s185 = sphi 0, %s183
      %s186 = sphi 0, %s185
      %s200 = sphi 0, %s186
      %s204 = sphi 0, %s204
      %s206 = sphi 0, %s204
      %s207 = sphi 0, %s206
      %s221 = sphi 0, %s207
      %s225 = sphi 0, %s225
      %s227 = sphi 0, %s225
      %s228 = sphi 0, %s227
      %s242 = sphi 0, %s228
      %s246 = sphi 0, %s246
      %s248 = sphi 0, %s246
      %s249 = sphi 0, %s248
      %s263 = sphi 0, %s249
      %s267 = sphi 0, %s267
      %s269 = sphi 0, %s267
      %s270 = sphi 0, %s269
      %s284 = sphi 0, %s270
    $region4: #{ncart_forward.1} parent=1 // loop_header_branch
      %27 = sbr.rel (%p25) target = $region8
    $region5: #{ncart_forward.1} parent=1 // loop_body
      %s29 = ssub.s32 %s24, 1
      %s30 = ssub.s32 %s24, 2
      %s31 = sadd.s32 %s24, 1
      %s32 = ssub.s32 %s24, %s31
      %p33 = scmp.eq.s32.totalorder %s32, 0
      %s35 = sadd.s32 %s34, 1
      %s36 = scalar_select %p33, %s34, %s35
      %p39 = pneg %p33
      %p40 = scmp.eq.s32.totalorder %s24, 1
      %p41 = por %p39, %p40
      %p42 = scmp.ne.s32.totalorder %s34, %s37
      %p43 = scmp.eq.s32.totalorder %s24, 0
      %p44 = por %p42, %p43
      %p45 = scmp.ne.s32.totalorder %s34, %s37
      %p46 = scmp.eq.s32.totalorder %s29, 1
      %p47 = por %p45, %p46
      %p48 = scmp.ne.s32.totalorder %s37, %s38
      %p49 = scmp.eq.s32.totalorder %s29, 0
      %p50 = por %p48, %p49
      %p51 = scmp.ne.s32.totalorder %s37, %s38
      %p52 = scmp.eq.s32.totalorder %s30, 1
      %p53 = por %p51, %p52
      %p55 = scmp.ne.s32.totalorder %s38, %s54
      %p56 = scmp.eq.s32.totalorder %s30, 0
      %p57 = por %p55, %p56
      %s58 = ssub.s32 %s24, %s31
      %p59 = scmp.eq.s32.totalorder %s58, 0
      %s61 = sadd.s32 %s60, 1
      %s62 = scalar_select %p59, %s60, %s61
      %p65 = pneg %p59
      %p66 = scmp.eq.s32.totalorder %s24, 1
      %p67 = por %p65, %p66
      %p68 = scmp.ne.s32.totalorder %s60, %s63
      %p69 = scmp.eq.s32.totalorder %s24, 0
      %p70 = por %p68, %p69
      %p71 = scmp.ne.s32.totalorder %s60, %s63
      %p72 = scmp.eq.s32.totalorder %s29, 1
      %p73 = por %p71, %p72
      %p74 = scmp.ne.s32.totalorder %s63, %s64
      %p75 = scmp.eq.s32.totalorder %s29, 0
      %p76 = por %p74, %p75
      %p77 = scmp.ne.s32.totalorder %s63, %s64
      %p78 = scmp.eq.s32.totalorder %s30, 1
      %p79 = por %p77, %p78
      %p81 = scmp.ne.s32.totalorder %s64, %s80
      %p82 = scmp.eq.s32.totalorder %s30, 0
      %p83 = por %p81, %p82
      %s84 = ssub.s32 %s24, %s31
      %p85 = scmp.eq.s32.totalorder %s84, 0
      %s87 = sadd.s32 %s86, 1
      %s88 = scalar_select %p85, %s86, %s87
      %p91 = pneg %p85
      %p92 = scmp.eq.s32.totalorder %s24, 1
      %p93 = por %p91, %p92
      %p94 = scmp.ne.s32.totalorder %s86, %s89
      %p95 = scmp.eq.s32.totalorder %s24, 0
      %p96 = por %p94, %p95
      %p97 = scmp.ne.s32.totalorder %s86, %s89
      %p98 = scmp.eq.s32.totalorder %s29, 1
      %p99 = por %p97, %p98
      %p100 = scmp.ne.s32.totalorder %s89, %s90
      %p101 = scmp.eq.s32.totalorder %s29, 0
      %p102 = por %p100, %p101
      %p103 = scmp.ne.s32.totalorder %s89, %s90
      %p104 = scmp.eq.s32.totalorder %s30, 1
      %p105 = por %p103, %p104
      %p107 = scmp.ne.s32.totalorder %s90, %s106
      %p108 = scmp.eq.s32.totalorder %s30, 0
      %p109 = por %p107, %p108
      %s110 = ssub.s32 %s24, %s31
      %p111 = scmp.eq.s32.totalorder %s110, 0
      %s113 = sadd.s32 %s112, 1
      %s114 = scalar_select %p111, %s112, %s113
      %p117 = pneg %p111
      %p118 = scmp.eq.s32.totalorder %s24, 1
      %p119 = por %p117, %p118
      %p120 = scmp.ne.s32.totalorder %s112, %s115
      %p121 = scmp.eq.s32.totalorder %s24, 0
      %p122 = por %p120, %p121
      %p123 = scmp.ne.s32.totalorder %s112, %s115
      %p124 = scmp.eq.s32.totalorder %s29, 1
      %p125 = por %p123, %p124
      %p126 = scmp.ne.s32.totalorder %s115, %s116
      %p127 = scmp.eq.s32.totalorder %s29, 0
      %p128 = por %p126, %p127
      %p129 = scmp.ne.s32.totalorder %s115, %s116
      %p130 = scmp.eq.s32.totalorder %s30, 1
      %p131 = por %p129, %p130
      %p133 = scmp.ne.s32.totalorder %s116, %s132
      %p134 = scmp.eq.s32.totalorder %s30, 0
      %p135 = por %p133, %p134
      %s136 = ssub.s32 %s24, %s31
      %p137 = scmp.eq.s32.totalorder %s136, 0
      %s139 = sadd.s32 %s138, 1
      %s140 = scalar_select %p137, %s138, %s139
      %p143 = pneg %p137
      %p144 = scmp.eq.s32.totalorder %s24, 1
      %p145 = por %p143, %p144
      %p146 = scmp.ne.s32.totalorder %s138, %s141
      %p147 = scmp.eq.s32.totalorder %s24, 0
      %p148 = por %p146, %p147
      %p149 = scmp.ne.s32.totalorder %s138, %s141
      %p150 = scmp.eq.s32.totalorder %s29, 1
      %p151 = por %p149, %p150
      %p152 = scmp.ne.s32.totalorder %s141, %s142
      %p153 = scmp.eq.s32.totalorder %s29, 0
      %p154 = por %p152, %p153
      %p155 = scmp.ne.s32.totalorder %s141, %s142
      %p156 = scmp.eq.s32.totalorder %s30, 1
      %p157 = por %p155, %p156
      %p159 = scmp.ne.s32.totalorder %s142, %s158
      %p160 = scmp.eq.s32.totalorder %s30, 0
      %p161 = por %p159, %p160
      %s163 = sadd.s32 %s162, 1
      %p166 = scmp.eq.s32.totalorder %s24, 1
      %p167 = scmp.ne.s32.totalorder %s162, %s164
      %p168 = scmp.eq.s32.totalorder %s24, 0
      %p169 = por %p167, %p168
      %p170 = scmp.ne.s32.totalorder %s162, %s164
      %p171 = scmp.eq.s32.totalorder %s29, 1
      %p172 = por %p170, %p171
      %p173 = scmp.ne.s32.totalorder %s164, %s165
      %p174 = scmp.eq.s32.totalorder %s29, 0
      %p175 = por %p173, %p174
      %p176 = scmp.ne.s32.totalorder %s164, %s165
      %p177 = scmp.eq.s32.totalorder %s30, 1
      %p178 = por %p176, %p177
      %p180 = scmp.ne.s32.totalorder %s165, %s179
      %p181 = scmp.eq.s32.totalorder %s30, 0
      %p182 = por %p180, %p181
      %s184 = sadd.s32 %s183, 1
      %p187 = scmp.eq.s32.totalorder %s24, 1
      %p188 = scmp.ne.s32.totalorder %s183, %s185
      %p189 = scmp.eq.s32.totalorder %s24, 0
      %p190 = por %p188, %p189
      %p191 = scmp.ne.s32.totalorder %s183, %s185
      %p192 = scmp.eq.s32.totalorder %s29, 1
      %p193 = por %p191, %p192
      %p194 = scmp.ne.s32.totalorder %s185, %s186
      %p195 = scmp.eq.s32.totalorder %s29, 0
      %p196 = por %p194, %p195
      %p197 = scmp.ne.s32.totalorder %s185, %s186
      %p198 = scmp.eq.s32.totalorder %s30, 1
      %p199 = por %p197, %p198
      %p201 = scmp.ne.s32.totalorder %s186, %s200
      %p202 = scmp.eq.s32.totalorder %s30, 0
      %p203 = por %p201, %p202
      %s205 = sadd.s32 %s204, 1
      %p208 = scmp.eq.s32.totalorder %s24, 1
      %p209 = scmp.ne.s32.totalorder %s204, %s206
      %p210 = scmp.eq.s32.totalorder %s24, 0
      %p211 = por %p209, %p210
      %p212 = scmp.ne.s32.totalorder %s204, %s206
      %p213 = scmp.eq.s32.totalorder %s29, 1
      %p214 = por %p212, %p213
      %p215 = scmp.ne.s32.totalorder %s206, %s207
      %p216 = scmp.eq.s32.totalorder %s29, 0
      %p217 = por %p215, %p216
      %p218 = scmp.ne.s32.totalorder %s206, %s207
      %p219 = scmp.eq.s32.totalorder %s30, 1
      %p220 = por %p218, %p219
      %p222 = scmp.ne.s32.totalorder %s207, %s221
      %p223 = scmp.eq.s32.totalorder %s30, 0
      %p224 = por %p222, %p223
      %s226 = sadd.s32 %s225, 1
      %p229 = scmp.eq.s32.totalorder %s24, 1
      %p230 = scmp.ne.s32.totalorder %s225, %s227
      %p231 = scmp.eq.s32.totalorder %s24, 0
      %p232 = por %p230, %p231
      %p233 = scmp.ne.s32.totalorder %s225, %s227
      %p234 = scmp.eq.s32.totalorder %s29, 1
      %p235 = por %p233, %p234
      %p236 = scmp.ne.s32.totalorder %s227, %s228
      %p237 = scmp.eq.s32.totalorder %s29, 0
      %p238 = por %p236, %p237
      %p239 = scmp.ne.s32.totalorder %s227, %s228
      %p240 = scmp.eq.s32.totalorder %s30, 1
      %p241 = por %p239, %p240
      %p243 = scmp.ne.s32.totalorder %s228, %s242
      %p244 = scmp.eq.s32.totalorder %s30, 0
      %p245 = por %p243, %p244
      %s247 = sadd.s32 %s246, 1
      %p250 = scmp.eq.s32.totalorder %s24, 1
      %p251 = scmp.ne.s32.totalorder %s246, %s248
      %p252 = scmp.eq.s32.totalorder %s24, 0
      %p253 = por %p251, %p252
      %p254 = scmp.ne.s32.totalorder %s246, %s248
      %p255 = scmp.eq.s32.totalorder %s29, 1
      %p256 = por %p254, %p255
      %p257 = scmp.ne.s32.totalorder %s248, %s249
      %p258 = scmp.eq.s32.totalorder %s29, 0
      %p259 = por %p257, %p258
      %p260 = scmp.ne.s32.totalorder %s248, %s249
      %p261 = scmp.eq.s32.totalorder %s30, 1
      %p262 = por %p260, %p261
      %p264 = scmp.ne.s32.totalorder %s249, %s263
      %p265 = scmp.eq.s32.totalorder %s30, 0
      %p266 = por %p264, %p265
      %s268 = sadd.s32 %s267, 1
      %p271 = scmp.eq.s32.totalorder %s24, 1
      %p272 = scmp.ne.s32.totalorder %s267, %s269
      %p273 = scmp.eq.s32.totalorder %s24, 0
      %p274 = por %p272, %p273
      %p275 = scmp.ne.s32.totalorder %s267, %s269
      %p276 = scmp.eq.s32.totalorder %s29, 1
      %p277 = por %p275, %p276
      %p278 = scmp.ne.s32.totalorder %s269, %s270
      %p279 = scmp.eq.s32.totalorder %s29, 0
      %p280 = por %p278, %p279
      %p281 = scmp.ne.s32.totalorder %s269, %s270
      %p282 = scmp.eq.s32.totalorder %s30, 1
      %p283 = por %p281, %p282
      %p285 = scmp.ne.s32.totalorder %s270, %s284
      %p286 = scmp.eq.s32.totalorder %s30, 0
      %p287 = por %p285, %p286
      %p288 = scmp.le.s32.totalorder 1, %s24
      %p289 = scmp.lt.s32.totalorder %s24, 3
      %p290 = pnand %p288, %p289
      %p291 = pneg %p290
      // Predicated region
      $region9: #{ncart_forward.1} parent=5 // pred_check
        _
      $region10: #{ncart_forward.1} parent=5 // pred_check_branch
        %293 = sbr.rel (%p290) target = $region12
      $region11: #{ncart_forward.1} parent=5 // pred_region
        %s294 = ssub.s32 %s24, 1
        // Predicated region
        $region13: #{ncart_forward.1} parent=11 // pred_check
          %p295 = pneg %p175
        $region14: #{ncart_forward.1} parent=11 // pred_check_branch
          %297 = sbr.rel (%p295) target = $region16
        $region15: #{ncart_forward.1} parent=11 // pred_region
          %s299 = ssub.s32 256, 256
          %300 = vsyncadd [#allocation7], %s299
          %s301 = sshll.u32 [#allocation8], 4
          %s302 = int_to_ptr.vmem [resolvable:$true] %s301
          %307 = dma.hbm_to_vmem [thread:$0]  %s6, 256, %s302, [#allocation7], 128, 128, 8
        $region16: #{ncart_forward.1} parent=11 // pred_fallthru
          _
        // Predicated region
        $region17: #{ncart_forward.1} parent=11 // pred_check
          %p308 = pneg %p196
        $region18: #{ncart_forward.1} parent=11 // pred_check_branch
          %310 = sbr.rel (%p308) target = $region20
        $region19: #{ncart_forward.1} parent=11 // pred_region
          %s312 = ssub.s32 32, 32
          %313 = vsyncadd [#allocation10], %s312
          %s315 = sshll.u32 [#allocation9], 4
          %s316 = int_to_ptr.vmem [resolvable:$true] %s315
          %318 = dma.hbm_to_vmem [thread:$0]  %s7, 32, %s316, [#allocation10]
        $region20: #{ncart_forward.1} parent=11 // pred_fallthru
          _
        // Predicated region
        $region21: #{ncart_forward.1} parent=11 // pred_check
          %p319 = pneg %p217
        $region22: #{ncart_forward.1} parent=11 // pred_check_branch
          %321 = sbr.rel (%p319) target = $region24
        $region23: #{ncart_forward.1} parent=11 // pred_region
          _
        $region24: #{ncart_forward.1} parent=11 // pred_fallthru
          _
        // Predicated region
        $region25: #{ncart_forward.1} parent=11 // pred_check
          %p322 = pneg %p238
        $region26: #{ncart_forward.1} parent=11 // pred_check_branch
          %324 = sbr.rel (%p322) target = $region28
        $region27: #{ncart_forward.1} parent=11 // pred_region
          _
        $region28: #{ncart_forward.1} parent=11 // pred_fallthru
          _
        // Predicated region
        $region29: #{ncart_forward.1} parent=11 // pred_check
          %p325 = pneg %p259
        $region30: #{ncart_forward.1} parent=11 // pred_check_branch
          %327 = sbr.rel (%p325) target = $region32
        $region31: #{ncart_forward.1} parent=11 // pred_region
          _
        $region32: #{ncart_forward.1} parent=11 // pred_fallthru
          _
      $region12: #{ncart_forward.1} parent=5 // pred_fallthru
        _
      %p328 = scmp.lt.s32.totalorder %s24, 2
      // Predicated region
      $region33: #{ncart_forward.1} parent=5 // pred_check
        %p329 = pneg %p328
      $region34: #{ncart_forward.1} parent=5 // pred_check_branch
        %331 = sbr.rel (%p329) target = $region36
      $region35: #{ncart_forward.1} parent=5 // pred_region
        // Predicated region
        $region37: #{ncart_forward.1} parent=35 // pred_check
          %p332 = pneg %p44
        $region38: #{ncart_forward.1} parent=35 // pred_check_branch
          %334 = sbr.rel (%p332) target = $region40
        $region39: #{ncart_forward.1} parent=35 // pred_region
          %p335 = scmp.lt.s32.totalorder %s24, 1
          %s336 = scalar_select %p335, %s24, 1
          %s337 = smul.addr %s336, 2
          %s338 = smul.addr %s337, 8
          %s339 = scalar_lea.vmem %s1, %s338
        $region40: #{ncart_forward.1} parent=35 // pred_fallthru
          _
        // Predicated region
        $region41: #{ncart_forward.1} parent=35 // pred_check
          %p340 = pneg %p70
        $region42: #{ncart_forward.1} parent=35 // pred_check_branch
          %342 = sbr.rel (%p340) target = $region44
        $region43: #{ncart_forward.1} parent=35 // pred_region
          %s343 = sand.u32 %s60, 1
          %s344 = scalar_lea.sflag [#allocation5], %s343
          %s345 = sand.u32 %s60, 1
          %s346 = smul.addr %s345, 2
          %s347 = scalar_lea.vmem [#allocation4], %s346
          %s349 = ssub.s32 32, 32
          %350 = vsyncadd %s344, %s349
          %s351 = smul.addr %s24, 32
          %s352 = scalar_lea.hbm %s2, %s351
          %s354 = sshll.u32 %s347, 4
          %s355 = int_to_ptr.vmem [resolvable:$true] %s354
          %357 = dma.hbm_to_vmem [thread:$0]  %s352, 32, %s355, %s344
        $region44: #{ncart_forward.1} parent=35 // pred_fallthru
          _
        // Predicated region
        $region45: #{ncart_forward.1} parent=35 // pred_check
          %p358 = pneg %p96
        $region46: #{ncart_forward.1} parent=35 // pred_check_branch
          %360 = sbr.rel (%p358) target = $region48
        $region47: #{ncart_forward.1} parent=35 // pred_region
          %p361 = scmp.lt.s32.totalorder %s24, 1
          %s362 = scalar_select %p361, %s24, 1
          %s363 = smul.addr %s362, 8
          %s364 = smul.addr %s363, 8
          %s365 = scalar_lea.vmem %s3, %s364
        $region48: #{ncart_forward.1} parent=35 // pred_fallthru
          _
        // Predicated region
        $region49: #{ncart_forward.1} parent=35 // pred_check
          %p366 = pneg %p122
        $region50: #{ncart_forward.1} parent=35 // pred_check_branch
          %368 = sbr.rel (%p366) target = $region52
        $region51: #{ncart_forward.1} parent=35 // pred_region
          %p369 = scmp.lt.s32.totalorder %s24, 1
          %s370 = scalar_select %p369, %s24, 1
          %s371 = smul.addr %s370, 8
          %s372 = smul.addr %s371, 8
          %s373 = scalar_lea.vmem %s4, %s372
        $region52: #{ncart_forward.1} parent=35 // pred_fallthru
          _
        // Predicated region
        $region53: #{ncart_forward.1} parent=35 // pred_check
          %p374 = pneg %p148
        $region54: #{ncart_forward.1} parent=35 // pred_check_branch
          %376 = sbr.rel (%p374) target = $region56
        $region55: #{ncart_forward.1} parent=35 // pred_region
          %s377 = sand.u32 %s24, 1
          %s378 = scalar_lea.sflag [#allocation7], %s377
          %s379 = sand.u32 %s138, 1
          %s380 = scalar_lea.vmem [#allocation6], %s379
          %s382 = ssub.s32 16, 16
          %383 = vsyncadd %s378, %s382
          %s384 = smul.addr %s24, 16
          %s385 = scalar_lea.hbm %s5, %s384
          %s387 = sshll.u32 %s380, 4
          %s388 = int_to_ptr.vmem [resolvable:$true] %s387
          %390 = dma.hbm_to_vmem [thread:$0]  %s385, 16, %s388, %s378
        $region56: #{ncart_forward.1} parent=35 // pred_fallthru
          _
      $region36: #{ncart_forward.1} parent=5 // pred_fallthru
        _
      %p391 = scmp.le.s32.totalorder 1, %s24
      %p392 = scmp.lt.s32.totalorder %s24, 3
      %p393 = pnand %p391, %p392
      %p394 = pneg %p393
      // Predicated region
      $region57: #{ncart_forward.1} parent=5 // pred_check
        _
      $region58: #{ncart_forward.1} parent=5 // pred_check_branch
        %396 = sbr.rel (%p393) target = $region60
      $region59: #{ncart_forward.1} parent=5 // pred_region
        %s397 = ssub.s32 %s24, 1
        %s398 = sand.u32 %s63, 1
        %s399 = scalar_lea.sflag [#allocation5], %s398
        %s400 = sand.u32 %s63, 1
        %s401 = smul.addr %s400, 2
        %s402 = scalar_lea.vmem [#allocation4], %s401
        // Predicated region
        $region61: #{ncart_forward.1} parent=59 // pred_check
          %p403 = pneg %p76
        $region62: #{ncart_forward.1} parent=59 // pred_check_branch
          %405 = sbr.rel (%p403) target = $region64
        $region63: #{ncart_forward.1} parent=59 // pred_region
          %406 = dma.done %s399, 32
        $region64: #{ncart_forward.1} parent=59 // pred_fallthru
          _
        %s407 = sand.u32 %s29, 1
        %s408 = scalar_lea.sflag [#allocation7], %s407
        %s409 = sand.u32 %s141, 1
        %s410 = scalar_lea.vmem [#allocation6], %s409
        // Predicated region
        $region65: #{ncart_forward.1} parent=59 // pred_check
          %p411 = pneg %p154
        $region66: #{ncart_forward.1} parent=59 // pred_check_branch
          %413 = sbr.rel (%p411) target = $region68
        $region67: #{ncart_forward.1} parent=59 // pred_region
          %414 = dma.done %s408, 16
        $region68: #{ncart_forward.1} parent=59 // pred_fallthru
          _
        // Predicated region
        $region69: #{ncart_forward.1} parent=59 // pred_check
          %p415 = pneg %p175
        $region70: #{ncart_forward.1} parent=59 // pred_check_branch
          %417 = sbr.rel (%p415) target = $region72
        $region71: #{ncart_forward.1} parent=59 // pred_region
          %418 = dma.done [#allocation7], 256
        $region72: #{ncart_forward.1} parent=59 // pred_fallthru
          _
        // Predicated region
        $region73: #{ncart_forward.1} parent=59 // pred_check
          %p419 = pneg %p196
        $region74: #{ncart_forward.1} parent=59 // pred_check_branch
          %421 = sbr.rel (%p419) target = $region76
        $region75: #{ncart_forward.1} parent=59 // pred_region
          %422 = dma.done [#allocation10], 32
        $region76: #{ncart_forward.1} parent=59 // pred_fallthru
          _
        %p423 = scmp.lt.s32.totalorder %s29, 1
        %s424 = scalar_select %p423, %s29, 1
        %s425 = smul.addr %s424, 2
        %s426 = smul.addr %s425, 8
        %s427 = scalar_lea.vmem %s1, %s426
        %p428 = pneg %p50
        %p429 = pneg %p47
        %s430 = sand.u32 %s63, 1
        %s431 = scalar_lea.sflag [#allocation5], %s430
        %s432 = sand.u32 %s63, 1
        %s433 = smul.addr %s432, 2
        %s434 = scalar_lea.vmem [#allocation4], %s433
        %p435 = pneg %p76
        %p436 = pneg %p73
        %p437 = scmp.lt.s32.totalorder %s29, 1
        %s438 = scalar_select %p437, %s29, 1
        %s439 = smul.addr %s438, 8
        %s440 = smul.addr %s439, 8
        %s441 = scalar_lea.vmem %s3, %s440
        %p442 = pneg %p102
        %p443 = pneg %p99
        %p444 = scmp.lt.s32.totalorder %s29, 1
        %s445 = scalar_select %p444, %s29, 1
        %s446 = smul.addr %s445, 8
        %s447 = smul.addr %s446, 8
        %s448 = scalar_lea.vmem %s4, %s447
        %p449 = pneg %p128
        %p450 = pneg %p125
        %s451 = sand.u32 %s29, 1
        %s452 = scalar_lea.sflag [#allocation7], %s451
        %s453 = sand.u32 %s141, 1
        %s454 = scalar_lea.vmem [#allocation6], %s453
        %p455 = pneg %p154
        %p456 = pneg %p151
        %p457 = pneg %p175
        %p458 = pneg %p172
        %p459 = pneg %p196
        %p460 = pneg %p193
        %p461 = pneg %p217
        %p462 = pneg %p214
        %p463 = pneg %p238
        %p464 = pneg %p235
        %p465 = pneg %p259
        %p466 = pneg %p256
        %p467 = pneg %p280
        %p468 = pneg %p277
        %p469 = scmp.lt.s32.totalorder %s29, 1
        %s470 = scalar_select %p469, %s29, 1
        %s471 = smul.addr %s470, 2
        %s472 = smul.addr %s471, 8
        %s473 = scalar_lea.vmem %s1, %s472
        %p474 = scmp.lt.s32.totalorder %s29, 1
        %s475 = scalar_select %p474, %s29, 1
        %s476 = smul.addr %s475, 8
        %s477 = smul.addr %s476, 8
        %s478 = scalar_lea.vmem %s3, %s477
        %p479 = scmp.lt.s32.totalorder %s29, 1
        %s480 = scalar_select %p479, %s29, 1
        %s481 = smul.addr %s480, 8
        %s482 = smul.addr %s481, 8
        %s483 = scalar_lea.vmem %s4, %s482
        %p484 = scmp.eq.s32.totalorder %s29, 0
        // Predicated region
        $region77: #{ncart_forward.1} parent=59 // pred_check
          %p485 = pneg %p484
        $region78: #{ncart_forward.1} parent=59 // pred_check_branch
          %487 = sbr.rel (%p485) target = $region80
        $region79: #{ncart_forward.1} parent=59 // pred_region
          %p489 = scmp.lt.u32.totalorder 8, 8
          %p490 = pneg %p489
          // Predicated region
          $region81: #{ncart_forward.1} parent=79 // pred_check
            _
          $region82: #{ncart_forward.1} parent=79 // pred_check_branch
            %492 = sbr.rel (%p489) target = $region84
          $region83: #{ncart_forward.1} parent=79 // pred_region
            %s507 = sand.u32 8, 7
            %p508 = scmp.eq.s32.totalorder %s507, 0
            // Predicated region
            $region96: #{ncart_forward.1} parent=83 // pred_check
              %p509 = pneg %p508
            $region97: #{ncart_forward.1} parent=83 // pred_check_branch
              %511 = sbr.rel (%p509) target = $region99
            $region98: #{ncart_forward.1} parent=83 // pred_region
              loop: start=0, step=1, limit=1
              $region100: #{ncart_forward.1} parent=98 // loop_pre_header
                _
              $region101: #{ncart_forward.1} parent=98 // loop_header
                %s513 = sphi 0, %s517
                %p514 = scmp.ge.s32.totalorder %s513, 1
                %s518 = sphi %s0, %s0
                %s519 = sphi [#allocation2], [#allocation2]
              $region102: #{ncart_forward.1} parent=98 // loop_header_branch
                %516 = sbr.rel (%p514) target = $region106
              $region103: #{ncart_forward.1} parent=98 // loop_body
                %v520 = vld [vmem:[%s518] sm:$0xff]
                %521 = vst [vmem:[%s519] sm:$0xff] %v520
              $region104: #{ncart_forward.1} parent=98 // loop_footer
                %s517 = sadd.s32 1, %s513
              $region105: #{ncart_forward.1} parent=98 // loop_footer_branch
                %512 = sbr.rel target = $region101
              $region106: #{ncart_forward.1} parent=98 // loop_exit
                _
            $region99: #{ncart_forward.1} parent=83 // pred_fallthru
              _
            %p522 = pneg %p508
            // Predicated region
            $region107: #{ncart_forward.1} parent=83 // pred_check
              _
            $region108: #{ncart_forward.1} parent=83 // pred_check_branch
              %524 = sbr.rel (%p508) target = $region110
            $region109: #{ncart_forward.1} parent=83 // pred_region
              %s525 = sand.u32 8, 7
            $region110: #{ncart_forward.1} parent=83 // pred_fallthru
              _
          $region84: #{ncart_forward.1} parent=79 // pred_fallthru
            _
          // Predicated region
          $region85: #{ncart_forward.1} parent=79 // pred_check
            %p493 = pneg %p489
          $region86: #{ncart_forward.1} parent=79 // pred_check_branch
            %495 = sbr.rel (%p493) target = $region88
          $region87: #{ncart_forward.1} parent=79 // pred_region
            %s496 = sshllo.u32 0, 8
            loop: start=0, step=1, limit=1
            $region89: #{ncart_forward.1} parent=87 // loop_pre_header
              _
            $region90: #{ncart_forward.1} parent=87 // loop_header
              %s498 = sphi 0, %s502
              %p499 = scmp.ge.s32.totalorder %s498, 1
              %s503 = sphi %s0, %s0
              %s504 = sphi [#allocation2], [#allocation2]
            $region91: #{ncart_forward.1} parent=87 // loop_header_branch
              %501 = sbr.rel (%p499) target = $region95
            $region92: #{ncart_forward.1} parent=87 // loop_body
              %v505 = vld [vmem:[%s503] sm:%s496]
              %506 = vst [vmem:[%s504] sm:%s496] %v505
            $region93: #{ncart_forward.1} parent=87 // loop_footer
              %s502 = sadd.s32 1, %s498
            $region94: #{ncart_forward.1} parent=87 // loop_footer_branch
              %497 = sbr.rel target = $region90
            $region95: #{ncart_forward.1} parent=87 // loop_exit
              _
          $region88: #{ncart_forward.1} parent=79 // pred_fallthru
            _
          // Predicated region
          $region111: #{ncart_forward.1} parent=79 // pred_check
            _
          $region112: #{ncart_forward.1} parent=79 // pred_check_branch
            %528 = sbr.rel (0) target = $region114
          $region113: #{ncart_forward.1} parent=79 // pred_region
            %529 = vsyncadd [#allocation3], 128
          $region114: #{ncart_forward.1} parent=79 // pred_fallthru
            _
          %s530 = smul.u32 8, 1
          %s531 = sshll.u32 %s530, 4
          %532 = dma.done [#allocation3], %s531
        $region80: #{ncart_forward.1} parent=59 // pred_fallthru
          _
        %v533 = vld [vmem:[#allocation2] sm:$0xff]
        %vm534 = vcmask 130048
        %v535 = vsel %vm534, %v533, 0.0
        %v536 = vrot.slane %v535, 4
        %v537 = vadd.f32 %v535, %v536
        %v538 = vrot.slane %v537, 2
        %v539 = vadd.f32 %v537, %v538
        %v540 = vrot.slane %v539, 1
        %v541 = vadd.f32 %v539, %v540
        %v542 = vrcp.pop 8.0
        %v543 = vmul.f32 %v541, %v542
        %v544 = vsub.f32 %v533, %v543
        %v545 = vmul.f32 %v544, %v544
        %v546 = vsel %vm534, %v545, 0.0
        %v547 = vrot.slane %v546, 4
        %v548 = vadd.f32 %v546, %v547
        %v549 = vrot.slane %v548, 2
        %v550 = vadd.f32 %v548, %v549
        %v551 = vrot.slane %v550, 1
        %v552 = vadd.f32 %v550, %v551
        %v553 = vmul.f32 %v552, %v542
        %v554 = vadd.f32 %v553, 1e-05
        %v555 = vrsqrt.pop %v554
        %v556 = vmul.f32 %v544, %v555
        %p557 = scmp.lt.s32.totalorder %s29, 1
        // Predicated region
        $region115: #{ncart_forward.1} parent=59 // pred_check
          %p558 = pneg %p557
        $region116: #{ncart_forward.1} parent=59 // pred_check_branch
          %560 = sbr.rel (%p558) target = $region118
        $region117: #{ncart_forward.1} parent=59 // pred_region
          %v561 = vld [vmem:[%s473] sm:$0xff]
          %v562 = vld [vmem:[%s473 + $0x8] sm:$0xff]
          %v564 = vsel %vm534, %v556, 0
          %566 = vmatprep.subr.mxu0 0.0
          %567 = vmatpush1.msra.mxu0 %v561
          %568 = vmatprep.subr.mxu0 0.0
          %569 = vmatpush1.msra.mxu0 %v562
          %570 = vmatprep.subr.mxu0 0.0
          %571 = vmatpush1.msra.mxu0 0.0
          %572 = vmatprep.subr.mxu0 0.0
          %573 = vmatpush1.msra.mxu0 0.0
          %574 = vmatprep.subr.mxu0 0.0
          %575 = vmatpush1.msra.mxu0 0.0
          %576 = vmatprep.subr.mxu0 0.0
          %577 = vmatpush1.msra.mxu0 0.0
          %578 = vmatprep.subr.mxu0 0.0
          %579 = vmatpush1.msra.mxu0 0.0
          %580 = vmatprep.subr.mxu0 0.0
          %581 = vmatpush1.msra.mxu0 0.0
          %582 = vmatprep.subr.mxu0 0.0
          %583 = vmatpush1.msra.mxu0 0.0
          %584 = vmatprep.subr.mxu0 0.0
          %585 = vmatpush1.msra.mxu0 0.0
          %586 = vmatprep.subr.mxu0 0.0
          %587 = vmatpush1.msra.mxu0 0.0
          %588 = vmatprep.subr.mxu0 0.0
          %589 = vmatpush1.msra.mxu0 0.0
          %590 = vmatprep.subr.mxu0 0.0
          %591 = vmatpush1.msra.mxu0 0.0
          %592 = vmatprep.subr.mxu0 0.0
          %593 = vmatpush1.msra.mxu0 0.0
          %594 = vmatprep.subr.mxu0 0.0
          %595 = vmatpush1.msra.mxu0 0.0
          %596 = vmatprep.subr.mxu0 0.0
          %597 = vmatpush1.msra.mxu0 0.0
          %598 = vmatprep.subr.mxu0 0.0
          %599 = vmatpush1.msra.mxu0 0.0
          %600 = vmatprep.subr.mxu0 0.0
          %601 = vmatpush1.msra.mxu0 0.0
          %602 = vmatprep.subr.mxu0 0.0
          %603 = vmatpush1.msra.mxu0 0.0
          %604 = vmatprep.subr.mxu0 0.0
          %605 = vmatpush1.msra.mxu0 0.0
          %606 = vmatprep.subr.mxu0 0.0
          %607 = vmatpush1.msra.mxu0 0.0
          %608 = vmatprep.subr.mxu0 0.0
          %609 = vmatpush1.msra.mxu0 0.0
          %610 = vmatprep.subr.mxu0 0.0
          %611 = vmatpush1.msra.mxu0 0.0
          %612 = vmatprep.subr.mxu0 0.0
          %613 = vmatpush1.msra.mxu0 0.0
          %614 = vmatprep.subr.mxu0 0.0
          %615 = vmatpush1.msra.mxu0 0.0
          %616 = vmatprep.subr.mxu0 0.0
          %617 = vmatpush1.msra.mxu0 0.0
          %618 = vmatprep.subr.mxu0 0.0
          %619 = vmatpush1.msra.mxu0 0.0
          %620 = vmatprep.subr.mxu0 0.0
          %621 = vmatpush1.msra.mxu0 0.0
          %622 = vmatprep.subr.mxu0 0.0
          %623 = vmatpush1.msra.mxu0 0.0
          %624 = vmatprep.subr.mxu0 0.0
          %625 = vmatpush1.msra.mxu0 0.0
          %626 = vmatprep.subr.mxu0 0.0
          %627 = vmatpush1.msra.mxu0 0.0
          %628 = vmatprep.subr.mxu0 0.0
          %629 = vmatpush1.msra.mxu0 0.0
          %630 = vmatprep.mubr.f32.mxu0 0.0
          %631 = vmatmul.mubr.f32.gmra.mrb[0].mxu0 %v564
          %v632 = vpop.f32.mrb[0].mxu0
          %v633 = vadd.f32 0.0, %v632
          %v634 = vpop.f32.mrb[0].mxu0
          %635 = vdwg.mxu0
          %v636 = vld [vmem:[%s402] sm:$0x3]
          %v637 = vld [vmem:[%s478] sm:$0xff]
          %v638 = vld [vmem:[%s478 + $0x8] sm:$0xff]
          %v639 = vld [vmem:[%s478 + $0x10] sm:$0xff]
          %v640 = vld [vmem:[%s478 + $0x18] sm:$0xff]
          %v641 = vld [vmem:[%s478 + $0x20] sm:$0xff]
          %v642 = vld [vmem:[%s478 + $0x28] sm:$0xff]
          %v643 = vld [vmem:[%s478 + $0x30] sm:$0xff]
          %v644 = vld [vmem:[%s478 + $0x38] sm:$0xff]
          %v645 = vld [vmem:[%s483] sm:$0xff]
          %v646 = vld [vmem:[%s483 + $0x8] sm:$0xff]
          %v647 = vld [vmem:[%s483 + $0x10] sm:$0xff]
          %v648 = vld [vmem:[%s483 + $0x18] sm:$0xff]
          %v649 = vld [vmem:[%s483 + $0x20] sm:$0xff]
          %v650 = vld [vmem:[%s483 + $0x28] sm:$0xff]
          %v651 = vld [vmem:[%s483 + $0x30] sm:$0xff]
          %v652 = vld [vmem:[%s483 + $0x38] sm:$0xff]
          %v653 = vld [vmem:[%s410] sm:$0x1]
          %v654 = vlaneseq
          %v655 = vshrl.u32 %v654, 7
          %v656 = vsub.s32 0, %v655
          %v657 = vrot.slane %v636, %v656
          %v658 = vsub.f32 %v633, %v657
          %v659 = vxor.u32 %v658, 2147483648
          %v660 = vmul.f32 %v659, 1.442695
          %v661 = vpow.pop %v660
          %v662 = vadd.f32 %v661, 1.0
          %v663 = vrcp.pop %v662
          %v664 = vmul.f32 1.0, %v663
          %v665 = vlaneseq
          %v666 = vshrl.u32 %v665, 7
          %v667 = vsub.s32 1, %v666
          %v668 = vrot.slane %v636, %v667
          %vm669 = vcmask 523264
          %v671 = vsel %vm669, %v664, 0
          %673 = vmatprep.subr.mxu0 0.0
          %674 = vmatpush1.msra.mxu0 %v637
          %675 = vmatprep.subr.mxu0 0.0
          %676 = vmatpush1.msra.mxu0 %v638
          %677 = vmatprep.subr.mxu0 0.0
          %678 = vmatpush1.msra.mxu0 %v639
          %679 = vmatprep.subr.mxu0 0.0
          %680 = vmatpush1.msra.mxu0 %v640
          %681 = vmatprep.subr.mxu0 0.0
          %682 = vmatpush1.msra.mxu0 %v641
          %683 = vmatprep.subr.mxu0 0.0
          %684 = vmatpush1.msra.mxu0 %v642
          %685 = vmatprep.subr.mxu0 0.0
          %686 = vmatpush1.msra.mxu0 %v643
          %687 = vmatprep.subr.mxu0 0.0
          %688 = vmatpush1.msra.mxu0 %v644
          %689 = vmatprep.subr.mxu0 0.0
          %690 = vmatpush1.msra.mxu0 0.0
          %691 = vmatprep.subr.mxu0 0.0
          %692 = vmatpush1.msra.mxu0 0.0
          %693 = vmatprep.subr.mxu0 0.0
          %694 = vmatpush1.msra.mxu0 0.0
          %695 = vmatprep.subr.mxu0 0.0
          %696 = vmatpush1.msra.mxu0 0.0
          %697 = vmatprep.subr.mxu0 0.0
          %698 = vmatpush1.msra.mxu0 0.0
          %699 = vmatprep.subr.mxu0 0.0
          %700 = vmatpush1.msra.mxu0 0.0
          %701 = vmatprep.subr.mxu0 0.0
          %702 = vmatpush1.msra.mxu0 0.0
          %703 = vmatprep.subr.mxu0 0.0
          %704 = vmatpush1.msra.mxu0 0.0
          %705 = vmatprep.subr.mxu0 0.0
          %706 = vmatpush1.msra.mxu0 0.0
          %707 = vmatprep.subr.mxu0 0.0
          %708 = vmatpush1.msra.mxu0 0.0
          %709 = vmatprep.subr.mxu0 0.0
          %710 = vmatpush1.msra.mxu0 0.0
          %711 = vmatprep.subr.mxu0 0.0
          %712 = vmatpush1.msra.mxu0 0.0
          %713 = vmatprep.subr.mxu0 0.0
          %714 = vmatpush1.msra.mxu0 0.0
          %715 = vmatprep.subr.mxu0 0.0
          %716 = vmatpush1.msra.mxu0 0.0
          %717 = vmatprep.subr.mxu0 0.0
          %718 = vmatpush1.msra.mxu0 0.0
          %719 = vmatprep.subr.mxu0 0.0
          %720 = vmatpush1.msra.mxu0 0.0
          %721 = vmatprep.subr.mxu0 0.0
          %722 = vmatpush1.msra.mxu0 0.0
          %723 = vmatprep.subr.mxu0 0.0
          %724 = vmatpush1.msra.mxu0 0.0
          %725 = vmatprep.subr.mxu0 0.0
          %726 = vmatpush1.msra.mxu0 0.0
          %727 = vmatprep.subr.mxu0 0.0
          %728 = vmatpush1.msra.mxu0 0.0
          %729 = vmatprep.subr.mxu0 0.0
          %730 = vmatpush1.msra.mxu0 0.0
          %731 = vmatprep.subr.mxu0 0.0
          %732 = vmatpush1.msra.mxu0 0.0
          %733 = vmatprep.subr.mxu0 0.0
          %734 = vmatpush1.msra.mxu0 0.0
          %735 = vmatprep.subr.mxu0 0.0
          %736 = vmatpush1.msra.mxu0 0.0
          %737 = vmatprep.mubr.f32.mxu0 0.0
          %738 = vmatmul.mubr.f32.gmra.mrb[0].mxu0 %v671
          %v739 = vpop.f32.mrb[0].mxu0
          %v740 = vadd.f32 %v668, %v739
          %v741 = vpop.f32.mrb[0].mxu0
          %742 = vdwg.mxu0
          %v743 = vmax.f32 %v740, 0.0
          %v745 = vlaneseq
          %v746 = vshrl.u32 %v745, 7
          %v747 = vsub.s32 0, %v746
          %v748 = vrot.slane %v653, %v747
          %v751 = vsel %vm669, %v743, 0
          %753 = vmatprep.subr.mxu0 0.0
          %754 = vmatpush1.msra.mxu0 %v645
          %755 = vmatprep.subr.mxu0 0.0
          %756 = vmatpush1.msra.mxu0 %v646
          %757 = vmatprep.subr.mxu0 0.0
          %758 = vmatpush1.msra.mxu0 %v647
          %759 = vmatprep.subr.mxu0 0.0
          %760 = vmatpush1.msra.mxu0 %v648
          %761 = vmatprep.subr.mxu0 0.0
          %762 = vmatpush1.msra.mxu0 %v649
          %763 = vmatprep.subr.mxu0 0.0
          %764 = vmatpush1.msra.mxu0 %v650
          %765 = vmatprep.subr.mxu0 0.0
          %766 = vmatpush1.msra.mxu0 %v651
          %767 = vmatprep.subr.mxu0 0.0
          %768 = vmatpush1.msra.mxu0 %v652
          %769 = vmatprep.subr.mxu0 0.0
          %770 = vmatpush1.msra.mxu0 0.0
          %771 = vmatprep.subr.mxu0 0.0
          %772 = vmatpush1.msra.mxu0 0.0
          %773 = vmatprep.subr.mxu0 0.0
          %774 = vmatpush1.msra.mxu0 0.0
          %775 = vmatprep.subr.mxu0 0.0
          %776 = vmatpush1.msra.mxu0 0.0
          %777 = vmatprep.subr.mxu0 0.0
          %778 = vmatpush1.msra.mxu0 0.0
          %779 = vmatprep.subr.mxu0 0.0
          %780 = vmatpush1.msra.mxu0 0.0
          %781 = vmatprep.subr.mxu0 0.0
          %782 = vmatpush1.msra.mxu0 0.0
          %783 = vmatprep.subr.mxu0 0.0
          %784 = vmatpush1.msra.mxu0 0.0
          %785 = vmatprep.subr.mxu0 0.0
          %786 = vmatpush1.msra.mxu0 0.0
          %787 = vmatprep.subr.mxu0 0.0
          %788 = vmatpush1.msra.mxu0 0.0
          %789 = vmatprep.subr.mxu0 0.0
          %790 = vmatpush1.msra.mxu0 0.0
          %791 = vmatprep.subr.mxu0 0.0
          %792 = vmatpush1.msra.mxu0 0.0
          %793 = vmatprep.subr.mxu0 0.0
          %794 = vmatpush1.msra.mxu0 0.0
          %795 = vmatprep.subr.mxu0 0.0
          %796 = vmatpush1.msra.mxu0 0.0
          %797 = vmatprep.subr.mxu0 0.0
          %798 = vmatpush1.msra.mxu0 0.0
          %799 = vmatprep.subr.mxu0 0.0
          %800 = vmatpush1.msra.mxu0 0.0
          %801 = vmatprep.subr.mxu0 0.0
          %802 = vmatpush1.msra.mxu0 0.0
          %803 = vmatprep.subr.mxu0 0.0
          %804 = vmatpush1.msra.mxu0 0.0
          %805 = vmatprep.subr.mxu0 0.0
          %806 = vmatpush1.msra.mxu0 0.0
          %807 = vmatprep.subr.mxu0 0.0
          %808 = vmatpush1.msra.mxu0 0.0
          %809 = vmatprep.subr.mxu0 0.0
          %810 = vmatpush1.msra.mxu0 0.0
          %811 = vmatprep.subr.mxu0 0.0
          %812 = vmatpush1.msra.mxu0 0.0
          %813 = vmatprep.subr.mxu0 0.0
          %814 = vmatpush1.msra.mxu0 0.0
          %815 = vmatprep.subr.mxu0 0.0
          %816 = vmatpush1.msra.mxu0 0.0
          %817 = vmatprep.mubr.f32.mxu0 0.0
          %818 = vmatmul.mubr.f32.gmra.mrb[0].mxu0 %v751
          %v819 = vpop.f32.mrb[0].mxu0
          %v820 = vadd.f32 %v748, %v819
          %v821 = vpop.f32.mrb[0].mxu0
          %822 = vdwg.mxu0
          %v823 = vadd.f32 %v820, %v533
          %v824 = vmax.f32 %v823, 0.0
          %825 = vst.msk [vmem:[#allocation2] sm:$0xff] %vm534, %v824
        $region118: #{ncart_forward.1} parent=59 // pred_fallthru
          _
        %p826 = scmp.eq.s32.totalorder %s29, 1
        // Predicated region
        $region119: #{ncart_forward.1} parent=59 // pred_check
          %p827 = pneg %p826
        $region120: #{ncart_forward.1} parent=59 // pred_check_branch
          %829 = sbr.rel (%p827) target = $region122
        $region121: #{ncart_forward.1} parent=59 // pred_region
          %v830 = vld [vmem:[#allocation8] sm:$0xff]
          %v831 = vld [vmem:[#allocation8 + $0x8] sm:$0xff]
          %v833 = vsel %vm534, %v556, 0
          %835 = vmatprep.subr.mxu0 0.0
          %836 = vmatpush1.msra.mxu0 %v830
          %837 = vmatprep.subr.mxu0 0.0
          %838 = vmatpush1.msra.mxu0 %v831
          %839 = vmatprep.subr.mxu0 0.0
          %840 = vmatpush1.msra.mxu0 0.0
          %841 = vmatprep.subr.mxu0 0.0
          %842 = vmatpush1.msra.mxu0 0.0
          %843 = vmatprep.subr.mxu0 0.0
          %844 = vmatpush1.msra.mxu0 0.0
          %845 = vmatprep.subr.mxu0 0.0
          %846 = vmatpush1.msra.mxu0 0.0
          %847 = vmatprep.subr.mxu0 0.0
          %848 = vmatpush1.msra.mxu0 0.0
          %849 = vmatprep.subr.mxu0 0.0
          %850 = vmatpush1.msra.mxu0 0.0
          %851 = vmatprep.subr.mxu0 0.0
          %852 = vmatpush1.msra.mxu0 0.0
          %853 = vmatprep.subr.mxu0 0.0
          %854 = vmatpush1.msra.mxu0 0.0
          %855 = vmatprep.subr.mxu0 0.0
          %856 = vmatpush1.msra.mxu0 0.0
          %857 = vmatprep.subr.mxu0 0.0
          %858 = vmatpush1.msra.mxu0 0.0
          %859 = vmatprep.subr.mxu0 0.0
          %860 = vmatpush1.msra.mxu0 0.0
          %861 = vmatprep.subr.mxu0 0.0
          %862 = vmatpush1.msra.mxu0 0.0
          %863 = vmatprep.subr.mxu0 0.0
          %864 = vmatpush1.msra.mxu0 0.0
          %865 = vmatprep.subr.mxu0 0.0
          %866 = vmatpush1.msra.mxu0 0.0
          %867 = vmatprep.subr.mxu0 0.0
          %868 = vmatpush1.msra.mxu0 0.0
          %869 = vmatprep.subr.mxu0 0.0
          %870 = vmatpush1.msra.mxu0 0.0
          %871 = vmatprep.subr.mxu0 0.0
          %872 = vmatpush1.msra.mxu0 0.0
          %873 = vmatprep.subr.mxu0 0.0
          %874 = vmatpush1.msra.mxu0 0.0
          %875 = vmatprep.subr.mxu0 0.0
          %876 = vmatpush1.msra.mxu0 0.0
          %877 = vmatprep.subr.mxu0 0.0
          %878 = vmatpush1.msra.mxu0 0.0
          %879 = vmatprep.subr.mxu0 0.0
          %880 = vmatpush1.msra.mxu0 0.0
          %881 = vmatprep.subr.mxu0 0.0
          %882 = vmatpush1.msra.mxu0 0.0
          %883 = vmatprep.subr.mxu0 0.0
          %884 = vmatpush1.msra.mxu0 0.0
          %885 = vmatprep.subr.mxu0 0.0
          %886 = vmatpush1.msra.mxu0 0.0
          %887 = vmatprep.subr.mxu0 0.0
          %888 = vmatpush1.msra.mxu0 0.0
          %889 = vmatprep.subr.mxu0 0.0
          %890 = vmatpush1.msra.mxu0 0.0
          %891 = vmatprep.subr.mxu0 0.0
          %892 = vmatpush1.msra.mxu0 0.0
          %893 = vmatprep.subr.mxu0 0.0
          %894 = vmatpush1.msra.mxu0 0.0
          %895 = vmatprep.subr.mxu0 0.0
          %896 = vmatpush1.msra.mxu0 0.0
          %897 = vmatprep.subr.mxu0 0.0
          %898 = vmatpush1.msra.mxu0 0.0
          %899 = vmatprep.mubr.f32.mxu0 0.0
          %900 = vmatmul.mubr.f32.gmra.mrb[0].mxu0 %v833
          %v901 = vpop.f32.mrb[0].mxu0
          %v902 = vadd.f32 0.0, %v901
          %v903 = vpop.f32.mrb[0].mxu0
          %904 = vdwg.mxu0
          %v905 = vld [vmem:[#allocation9] sm:$0x3]
          %v906 = vld [vmem:[%s8] sm:$0xff]
          %v907 = vld [vmem:[%s8 + $0x8] sm:$0xff]
          %v908 = vld [vmem:[%s8 + $0x10] sm:$0xff]
          %v909 = vld [vmem:[%s8 + $0x18] sm:$0xff]
          %v910 = vld [vmem:[%s9] sm:$0xff]
          %v911 = vld [vmem:[%s9 + $0x8] sm:$0xff]
          %v912 = vld [vmem:[%s9 + $0x10] sm:$0xff]
          %v913 = vld [vmem:[%s9 + $0x18] sm:$0xff]
          %v914 = vld [vmem:[%s10] sm:$0x1]
          %v915 = vlaneseq
          %v916 = vshrl.u32 %v915, 7
          %v917 = vsub.s32 0, %v916
          %v918 = vrot.slane %v905, %v917
          %v919 = vsub.f32 %v902, %v918
          %v920 = vxor.u32 %v919, 2147483648
          %v921 = vmul.f32 %v920, 1.442695
          %v922 = vpow.pop %v921
          %v923 = vadd.f32 %v922, 1.0
          %v924 = vrcp.pop %v923
          %v925 = vmul.f32 1.0, %v924
          %v926 = vlaneseq
          %v927 = vshrl.u32 %v926, 7
          %v928 = vsub.s32 1, %v927
          %v929 = vrot.slane %v905, %v928
          %vm930 = vcmask 261120
          %v932 = vsel %vm930, %v925, 0
          %934 = vmatprep.subr.mxu0 0.0
          %935 = vmatpush1.msra.mxu0 %v906
          %936 = vmatprep.subr.mxu0 0.0
          %937 = vmatpush1.msra.mxu0 %v907
          %938 = vmatprep.subr.mxu0 0.0
          %939 = vmatpush1.msra.mxu0 %v908
          %940 = vmatprep.subr.mxu0 0.0
          %941 = vmatpush1.msra.mxu0 %v909
          %942 = vmatprep.subr.mxu0 0.0
          %943 = vmatpush1.msra.mxu0 0.0
          %944 = vmatprep.subr.mxu0 0.0
          %945 = vmatpush1.msra.mxu0 0.0
          %946 = vmatprep.subr.mxu0 0.0
          %947 = vmatpush1.msra.mxu0 0.0
          %948 = vmatprep.subr.mxu0 0.0
          %949 = vmatpush1.msra.mxu0 0.0
          %950 = vmatprep.subr.mxu0 0.0
          %951 = vmatpush1.msra.mxu0 0.0
          %952 = vmatprep.subr.mxu0 0.0
          %953 = vmatpush1.msra.mxu0 0.0
          %954 = vmatprep.subr.mxu0 0.0
          %955 = vmatpush1.msra.mxu0 0.0
          %956 = vmatprep.subr.mxu0 0.0
          %957 = vmatpush1.msra.mxu0 0.0
          %958 = vmatprep.subr.mxu0 0.0
          %959 = vmatpush1.msra.mxu0 0.0
          %960 = vmatprep.subr.mxu0 0.0
          %961 = vmatpush1.msra.mxu0 0.0
          %962 = vmatprep.subr.mxu0 0.0
          %963 = vmatpush1.msra.mxu0 0.0
          %964 = vmatprep.subr.mxu0 0.0
          %965 = vmatpush1.msra.mxu0 0.0
          %966 = vmatprep.subr.mxu0 0.0
          %967 = vmatpush1.msra.mxu0 0.0
          %968 = vmatprep.subr.mxu0 0.0
          %969 = vmatpush1.msra.mxu0 0.0
          %970 = vmatprep.subr.mxu0 0.0
          %971 = vmatpush1.msra.mxu0 0.0
          %972 = vmatprep.subr.mxu0 0.0
          %973 = vmatpush1.msra.mxu0 0.0
          %974 = vmatprep.subr.mxu0 0.0
          %975 = vmatpush1.msra.mxu0 0.0
          %976 = vmatprep.subr.mxu0 0.0
          %977 = vmatpush1.msra.mxu0 0.0
          %978 = vmatprep.subr.mxu0 0.0
          %979 = vmatpush1.msra.mxu0 0.0
          %980 = vmatprep.subr.mxu0 0.0
          %981 = vmatpush1.msra.mxu0 0.0
          %982 = vmatprep.subr.mxu0 0.0
          %983 = vmatpush1.msra.mxu0 0.0
          %984 = vmatprep.subr.mxu0 0.0
          %985 = vmatpush1.msra.mxu0 0.0
          %986 = vmatprep.subr.mxu0 0.0
          %987 = vmatpush1.msra.mxu0 0.0
          %988 = vmatprep.subr.mxu0 0.0
          %989 = vmatpush1.msra.mxu0 0.0
          %990 = vmatprep.subr.mxu0 0.0
          %991 = vmatpush1.msra.mxu0 0.0
          %992 = vmatprep.subr.mxu0 0.0
          %993 = vmatpush1.msra.mxu0 0.0
          %994 = vmatprep.subr.mxu0 0.0
          %995 = vmatpush1.msra.mxu0 0.0
          %996 = vmatprep.subr.mxu0 0.0
          %997 = vmatpush1.msra.mxu0 0.0
          %998 = vmatprep.mubr.f32.mxu0 0.0
          %999 = vmatmul.mubr.f32.gmra.mrb[0].mxu0 %v932
          %v1000 = vpop.f32.mrb[0].mxu0
          %v1001 = vadd.f32 %v929, %v1000
          %v1002 = vpop.f32.mrb[0].mxu0
          %1003 = vdwg.mxu0
          %v1004 = vmax.f32 %v1001, 0.0
          %v1006 = vlaneseq
          %v1007 = vshrl.u32 %v1006, 7
          %v1008 = vsub.s32 0, %v1007
          %v1009 = vrot.slane %v914, %v1008
          %v1012 = vsel %vm930, %v1004, 0
          %1014 = vmatprep.subr.mxu0 0.0
          %1015 = vmatpush1.msra.mxu0 %v910
          %1016 = vmatprep.subr.mxu0 0.0
          %1017 = vmatpush1.msra.mxu0 %v911
          %1018 = vmatprep.subr.mxu0 0.0
          %1019 = vmatpush1.msra.mxu0 %v912
          %1020 = vmatprep.subr.mxu0 0.0
          %1021 = vmatpush1.msra.mxu0 %v913
          %1022 = vmatprep.subr.mxu0 0.0
          %1023 = vmatpush1.msra.mxu0 0.0
          %1024 = vmatprep.subr.mxu0 0.0
          %1025 = vmatpush1.msra.mxu0 0.0
          %1026 = vmatprep.subr.mxu0 0.0
          %1027 = vmatpush1.msra.mxu0 0.0
          %1028 = vmatprep.subr.mxu0 0.0
          %1029 = vmatpush1.msra.mxu0 0.0
          %1030 = vmatprep.subr.mxu0 0.0
          %1031 = vmatpush1.msra.mxu0 0.0
          %1032 = vmatprep.subr.mxu0 0.0
          %1033 = vmatpush1.msra.mxu0 0.0
          %1034 = vmatprep.subr.mxu0 0.0
          %1035 = vmatpush1.msra.mxu0 0.0
          %1036 = vmatprep.subr.mxu0 0.0
          %1037 = vmatpush1.msra.mxu0 0.0
          %1038 = vmatprep.subr.mxu0 0.0
          %1039 = vmatpush1.msra.mxu0 0.0
          %1040 = vmatprep.subr.mxu0 0.0
          %1041 = vmatpush1.msra.mxu0 0.0
          %1042 = vmatprep.subr.mxu0 0.0
          %1043 = vmatpush1.msra.mxu0 0.0
          %1044 = vmatprep.subr.mxu0 0.0
          %1045 = vmatpush1.msra.mxu0 0.0
          %1046 = vmatprep.subr.mxu0 0.0
          %1047 = vmatpush1.msra.mxu0 0.0
          %1048 = vmatprep.subr.mxu0 0.0
          %1049 = vmatpush1.msra.mxu0 0.0
          %1050 = vmatprep.subr.mxu0 0.0
          %1051 = vmatpush1.msra.mxu0 0.0
          %1052 = vmatprep.subr.mxu0 0.0
          %1053 = vmatpush1.msra.mxu0 0.0
          %1054 = vmatprep.subr.mxu0 0.0
          %1055 = vmatpush1.msra.mxu0 0.0
          %1056 = vmatprep.subr.mxu0 0.0
          %1057 = vmatpush1.msra.mxu0 0.0
          %1058 = vmatprep.subr.mxu0 0.0
          %1059 = vmatpush1.msra.mxu0 0.0
          %1060 = vmatprep.subr.mxu0 0.0
          %1061 = vmatpush1.msra.mxu0 0.0
          %1062 = vmatprep.subr.mxu0 0.0
          %1063 = vmatpush1.msra.mxu0 0.0
          %1064 = vmatprep.subr.mxu0 0.0
          %1065 = vmatpush1.msra.mxu0 0.0
          %1066 = vmatprep.subr.mxu0 0.0
          %1067 = vmatpush1.msra.mxu0 0.0
          %1068 = vmatprep.subr.mxu0 0.0
          %1069 = vmatpush1.msra.mxu0 0.0
          %1070 = vmatprep.subr.mxu0 0.0
          %1071 = vmatpush1.msra.mxu0 0.0
          %1072 = vmatprep.subr.mxu0 0.0
          %1073 = vmatpush1.msra.mxu0 0.0
          %1074 = vmatprep.subr.mxu0 0.0
          %1075 = vmatpush1.msra.mxu0 0.0
          %1076 = vmatprep.subr.mxu0 0.0
          %1077 = vmatpush1.msra.mxu0 0.0
          %1078 = vmatprep.mubr.f32.mxu0 0.0
          %1079 = vmatmul.mubr.f32.gmra.mrb[0].mxu0 %v1012
          %v1080 = vpop.f32.mrb[0].mxu0
          %v1081 = vadd.f32 %v1009, %v1080
          %v1082 = vpop.f32.mrb[0].mxu0
          %1083 = vdwg.mxu0
          %vm1084 = vcmask 31744
          %1085 = vst.msk [vmem:[%s11] sm:$0xff] %vm1084, %v1081
        $region122: #{ncart_forward.1} parent=59 // pred_fallthru
          _
        // Predicated region
        $region123: #{ncart_forward.1} parent=59 // pred_check
          %p1086 = pneg %p277
        $region124: #{ncart_forward.1} parent=59 // pred_check_branch
          %1088 = sbr.rel (%p1086) target = $region126
        $region125: #{ncart_forward.1} parent=59 // pred_region
          _
        $region126: #{ncart_forward.1} parent=59 // pred_fallthru
          _
        // Predicated region
        $region127: #{ncart_forward.1} parent=59 // pred_check
          %p1089 = pneg %p277
        $region128: #{ncart_forward.1} parent=59 // pred_check_branch
          %1091 = sbr.rel (%p1089) target = $region130
        $region129: #{ncart_forward.1} parent=59 // pred_region
          _
        $region130: #{ncart_forward.1} parent=59 // pred_fallthru
          _
      $region60: #{ncart_forward.1} parent=5 // pred_fallthru
        _
      %p1092 = scmp.le.s32.totalorder 2, %s24
      // Predicated region
      $region131: #{ncart_forward.1} parent=5 // pred_check
        %p1093 = pneg %p1092
      $region132: #{ncart_forward.1} parent=5 // pred_check_branch
        %1095 = sbr.rel (%p1093) target = $region134
      $region133: #{ncart_forward.1} parent=5 // pred_region
        %s1096 = ssub.s32 %s24, 2
      $region134: #{ncart_forward.1} parent=5 // pred_fallthru
        _
    $region6: #{ncart_forward.1} parent=1 // loop_footer
      %s28 = sadd.s32 1, %s24
    $region7: #{ncart_forward.1} parent=1 // loop_footer_branch
      %23 = sbr.rel target = $region3
    $region8: #{ncart_forward.1} parent=1 // loop_exit
      _
    %1097 = vsyncpa [#allocation5], 1
    %s1098 = scalar_lea.sflag [#allocation5], 1
    %1099 = vsyncpa %s1098, 1
    %1100 = vsyncpa [#allocation7], 1
    %s1101 = scalar_lea.sflag [#allocation7], 1
    %1102 = vsyncpa %s1101, 1
    %1103 = vsyncpa [#allocation10], 1
  %1104 = vsyncmov [#allocation3]
  %s1105 = vpop.sfrf %1104
  %p1106 = scmp.eq.s32.totalorder %s1105, 0
  %p1107 = pneg %p1106
  %1109 = shalt.err (%p1107)

</llo_original>
